<compile_context>
chip_gen: v6e
topology: v6e:2x2x1
jax: 0.10.0
libtpu: 0.0.40
codegen_flags: <defaults>
</compile_context>

<pallas_src>
import jax
import jax.numpy as jnp
from jax.experimental import pallas as pl
from jax.experimental.pallas import tpu as pltpu


_LANES = 128
_TARGET_BLOCK_BYTES = 4 * 1024 * 1024      # per-input per-block DMA (~8 MiB/step total)
_MEGACORE_SPLIT_BYTES = 2 * 1024 * 1024    # above this, force >= 2 parallel blocks


def _round_up(x, m):
    return -(-x // m) * m


def _make_partial_sqdiff_kernel(rows, tile_rows, num_blocks, ragged):
    """Per-block partial sum of (a-b)^2, reduced over the sublane (row) axis."""
    last = num_blocks - 1
    tail_row0 = last * tile_rows  # static Python ints closed over by the kernel

    def kernel(a_ref, b_ref, o_ref):
        d = a_ref[...].astype(jnp.float32) - b_ref[...].astype(jnp.float32)
        dd = d * d

        if not ragged:
            # (tile_rows, 128) -> (1, 128) lane-dense per-block partials (VPU only).
            o_ref[...] = jnp.sum(dd, axis=0, keepdims=True)
        else:
            is_last = pl.program_id(0) == last

            @pl.when(jnp.logical_not(is_last))
            def _():
                # Interior blocks: no masking cost at all.
                o_ref[...] = jnp.sum(dd, axis=0, keepdims=True)

            @pl.when(is_last)
            def _():
                # Last block extends past the real rows; OOB region holds garbage that
                # is squared (possibly NaN/Inf) but then discarded by the select, which
                # does not propagate values from the untaken branch.
                rid = jax.lax.broadcasted_iota(jnp.int32, (tile_rows, 1), 0)
                valid = (tail_row0 + rid) < rows          # sublane-only (tile_rows, 1)
                dd_masked = jnp.where(valid, dd, 0.0)     # broadcast across lanes
                o_ref[...] = jnp.sum(dd_masked, axis=0, keepdims=True)

    return kernel


def mse_loss(model_output, text_embedding, *, tile_rows=None,
             split_bytes_threshold=_MEGACORE_SPLIT_BYTES, lanes=_LANES):
    assert model_output.shape == text_embedding.shape, "shapes must match"
    assert model_output.dtype == text_embedding.dtype, "dtypes must match"
    n_elems = model_output.size
    # TODO(synk): element counts not divisible by 128 would also need a lane mask.
    assert n_elems % lanes == 0, "total element count must be divisible by 128"

    a2 = model_output.reshape(-1, lanes)
    b2 = text_embedding.reshape(-1, lanes)
    rows = a2.shape[0]
    itemsize = jnp.dtype(a2.dtype).itemsize
    row_bytes = lanes * itemsize

    if tile_rows is None:
        # Dtype-aware: ~4 MiB per input per block (bf16 gets 2x the rows of f32).
        tile_rows = max(8, (_TARGET_BLOCK_BYTES // row_bytes) // 8 * 8)

    if rows <= tile_rows:
        if rows * row_bytes >= split_bytes_threshold:
            # Keep >= 2 blocks so the "parallel" grid axis can shard across v7x cores.
            tile_rows = _round_up(-(-rows // 2), 8)
        else:
            # Single full-extent block (always a legal block shape, even if rows % 8 != 0).
            tile_rows = rows
    else:
        # Multi-block regime: keep the row tile a multiple of 8 (sublane alignment).
        tile_rows = max(8, (tile_rows // 8) * 8)

    num_blocks = pl.cdiv(rows, tile_rows)
    ragged = (rows % tile_rows) != 0

    # 2 inputs x 2 pipeline buffers per block, plus headroom for the tiny output blocks
    # and compiler scratch.  Explicit so big tiles clear v5e's 16 MiB default scoped VMEM.
    block_bytes = tile_rows * row_bytes
    vmem_limit = min(max(4 * block_bytes + (4 << 20), 16 << 20), 64 << 20)

    partials = pl.pallas_call(
        _make_partial_sqdiff_kernel(rows, tile_rows, num_blocks, ragged),
        out_shape=jax.ShapeDtypeStruct((num_blocks, lanes), jnp.float32),
        grid_spec=pltpu.PrefetchScalarGridSpec(
            num_scalar_prefetch=0,
            grid=(num_blocks,),
            in_specs=[
                pl.BlockSpec((tile_rows, lanes), lambda i: (i, 0)),
                pl.BlockSpec((tile_rows, lanes), lambda i: (i, 0)),
            ],
            out_specs=pl.BlockSpec((1, lanes), lambda i: (i, 0)),
        ),
        compiler_params=pltpu.CompilerParams(
            # Independent per-block partials -> parallel grid (2x on v7x megacore).
            dimension_semantics=("parallel",),
            vmem_limit_bytes=vmem_limit,
        ),
    )(a2, b2)

    # 'mean' reduction: tiny cross-block/lane reduce + divide by ORIGINAL element count.
    return (jnp.sum(partials) / jnp.float32(n_elems)).astype(jnp.float32)


if __name__ == "__main__":
    key = jax.random.PRNGKey(0)
    k1, k2, k3, k4, k5, k6 = jax.random.split(key, 6)

    # Small shapes consistent with the module: (batch=8, embedding_dim=256).
    model_output = jax.random.normal(k1, (8, 256), dtype=jnp.float32)
    text_embedding = jax.random.normal(k2, (8, 256), dtype=jnp.float32)
    loss = mse_loss(model_output, text_embedding)
    jax.block_until_ready(loss)
    ref = jnp.mean((model_output - text_embedding) ** 2)
    assert jnp.allclose(loss, ref, rtol=1e-5, atol=1e-6), (loss, ref)

    # Multi-block + ragged tail: exercises the pl.when-gated sublane mask on the last block.
    a_r = jax.random.normal(k3, (24, 128), dtype=jnp.float32)
    b_r = jax.random.normal(k4, (24, 128), dtype=jnp.float32)
    loss_r = mse_loss(a_r, b_r, tile_rows=16)  # rows=24 -> 2 blocks, last one masked
    jax.block_until_ready(loss_r)
    ref_r = jnp.mean((a_r - b_r) ** 2)
    assert jnp.allclose(loss_r, ref_r, rtol=1e-5, atol=1e-6), (loss_r, ref_r)

    # bf16 native-dtype streaming (in-register f32 upcast) + forced >=2-block megacore split.
    a_h = jax.random.normal(k5, (64, 256), dtype=jnp.float32).astype(jnp.bfloat16)
    b_h = jax.random.normal(k6, (64, 256), dtype=jnp.float32).astype(jnp.bfloat16)
    loss_h = mse_loss(a_h, b_h, split_bytes_threshold=1024)
    jax.block_until_ready(loss_h)
    ref_h = jnp.mean((a_h.astype(jnp.float32) - b_h.astype(jnp.float32)) ** 2)
    assert jnp.allclose(loss_h, ref_h, rtol=1e-5, atol=1e-6), (loss_h, ref_h)

    print("KERNEL_OK")
</pallas_src>

<mosaic_0001>
module attributes {stable_mosaic.version = 11 : i64} {
  func.func @kernel(%arg0: i32, %arg1: memref<16x128xf32, #tpu.memory_space<vmem>>, %arg2: memref<16x128xf32, #tpu.memory_space<vmem>>, %arg3: memref<1x128xf32, #tpu.memory_space<vmem>>) attributes {dimension_semantics = [#tpu.dimension_semantics<parallel>], iteration_bounds = array<i64: 1>, scalar_prefetch = 0 : i64, scratch_operands = 0 : i64, tpu.core_type = #tpu.core_type<tc>, window_params = [{transform_indices = @transform_0, window_bounds = array<i64: 16, 128>}, {transform_indices = @transform_1, window_bounds = array<i64: 16, 128>}, {transform_indices = @transform_2, window_bounds = array<i64: 1, 128>}]} {
    %c0 = arith.constant 0 : index
    %c0_0 = arith.constant 0 : index
    %0 = vector.load %arg1[%c0, %c0_0] : memref<16x128xf32, #tpu.memory_space<vmem>>, vector<16x128xf32>
    %c0_1 = arith.constant 0 : index
    %c0_2 = arith.constant 0 : index
    %1 = vector.load %arg2[%c0_1, %c0_2] : memref<16x128xf32, #tpu.memory_space<vmem>>, vector<16x128xf32>
    %2 = arith.subf %0, %1 : vector<16x128xf32>
    %3 = arith.mulf %2, %2 : vector<16x128xf32>
    %cst = arith.constant dense<0.000000e+00> : vector<128xf32>
    %4 = vector.multi_reduction <add>, %3, %cst [0] : vector<16x128xf32> to vector<128xf32>
    %5 = vector.shape_cast %4 : vector<128xf32> to vector<1x128xf32>
    %c0_3 = arith.constant 0 : index
    %c0_4 = arith.constant 0 : index
    %6 = vector.load %arg3[%c0_3, %c0_4] : memref<1x128xf32, #tpu.memory_space<vmem>>, vector<1x128xf32>
    tpu.vector_store %arg3[%c0_3, %c0_4], %5 {strides = array<i32>} : memref<1x128xf32, #tpu.memory_space<vmem>>, vector<1x128xf32>,
    return
  }
  func.func @transform_0(%arg0: i32) -> (i32, i32) {
    %c0_i32 = arith.constant 0 : i32
    %c0_i32_0 = arith.constant 0 : i32
    return %arg0, %c0_i32 : i32, i32
  }
  func.func @transform_1(%arg0: i32) -> (i32, i32) {
    %c0_i32 = arith.constant 0 : i32
    %c0_i32_0 = arith.constant 0 : i32
    return %arg0, %c0_i32 : i32, i32
  }
  func.func @transform_2(%arg0: i32) -> (i32, i32) {
    %c0_i32 = arith.constant 0 : i32
    %c0_i32_0 = arith.constant 0 : i32
    return %arg0, %c0_i32 : i32, i32
  }
}

</mosaic_0001>

<llo_original>
// kernel: tpu_custom_call.1
$region0: #{tpu_custom_call.1}
  #allocation0 [shape = 'u32[]', space=smem, size = 0x4, offset = 0x4, fixed_abs, tag = 'smem constant byte address 0x4 - core index']
  #allocation1 [shape = 'u32[144,128]{1,0:T(1,128)}', space=vmem, size = 0x12000, scoped, tag = 'internal scratch']
  %s0 = inlined_call_operand.hbm [shape: f32[16,128], index: 0, kind: input, shape index: {}]
  %s1 = inlined_call_operand.hbm [shape: f32[16,128], index: 1, kind: input, shape index: {}]
  %s2 = inlined_call_operand.hbm [shape: f32[1,128], index: 2, kind: output, shape index: {}]
  %s3 = sld [smem:[#allocation0]]
  $region26: #{tpu_custom_call.1} parent=0
    _
  %s5 = ssub.s32 1, %s3
  %s6 = scalar_select 0, %s5, %s3
  $region1: #{tpu_custom_call.1} parent=0
    #allocation2 [shape = 'u8[8192]{0}', space=vmem, size = 0x2000, scoped, tag = 'input window, operand 0, single buffered']
    #allocation3 [shape = 's32[1]{0}', space=sflag, size = 0x4, scoped, tag = 'scoped memory for tpu_custom_call.1']
    #allocation4 [shape = 's32[1]{0}', space=sflag, size = 0x4, scoped, tag = 'scoped memory for tpu_custom_call.1']
    #allocation5 [shape = 'u8[8192]{0}', space=vmem, size = 0x2000, scoped, tag = 'input window, operand 1, single buffered']
    #allocation6 [shape = 's32[1]{0}', space=sflag, size = 0x4, scoped, tag = 'scoped memory for tpu_custom_call.1']
    #allocation7 [shape = 'u8[512]{0}', space=vmem, size = 0x400, scoped, tag = 'output window, operand 0, single buffered']
    %7 = vsyncpa [#allocation3], 0
    %8 = vsyncpa [#allocation6], 0
    %9 = vsyncpa [#allocation4], 0
    // Predicated region
    $region2: #{tpu_custom_call.1} parent=1 // pred_check
      _
    $region3: #{tpu_custom_call.1} parent=1 // pred_check_branch
      %11 = sbr.rel (0) target = $region5
    $region4: #{tpu_custom_call.1} parent=1 // pred_region
      %s13 = ssub.s32 256, 256
      %14 = vsyncadd [#allocation3], %s13
      %s15 = sshll.u32 [#allocation2], 4
      %s16 = int_to_ptr.vmem [resolvable:$true] %s15
      %21 = dma.hbm_to_vmem [thread:$0]  %s0, 256, %s16, [#allocation3], 128, 128, 8
    $region5: #{tpu_custom_call.1} parent=1 // pred_fallthru
      _
    // Predicated region
    $region6: #{tpu_custom_call.1} parent=1 // pred_check
      _
    $region7: #{tpu_custom_call.1} parent=1 // pred_check_branch
      %23 = sbr.rel (0) target = $region9
    $region8: #{tpu_custom_call.1} parent=1 // pred_region
      %s25 = ssub.s32 256, 256
      %26 = vsyncadd [#allocation6], %s25
      %s27 = sshll.u32 [#allocation5], 4
      %s28 = int_to_ptr.vmem [resolvable:$true] %s27
      %33 = dma.hbm_to_vmem [thread:$0]  %s1, 256, %s28, [#allocation6], 128, 128, 8
    $region9: #{tpu_custom_call.1} parent=1 // pred_fallthru
      _
    // Predicated region
    $region10: #{tpu_custom_call.1} parent=1 // pred_check
      _
    $region11: #{tpu_custom_call.1} parent=1 // pred_check_branch
      %35 = sbr.rel (0) target = $region13
    $region12: #{tpu_custom_call.1} parent=1 // pred_region
      %36 = dma.done [#allocation3], 256
    $region13: #{tpu_custom_call.1} parent=1 // pred_fallthru
      _
    // Predicated region
    $region14: #{tpu_custom_call.1} parent=1 // pred_check
      _
    $region15: #{tpu_custom_call.1} parent=1 // pred_check_branch
      %38 = sbr.rel (0) target = $region17
    $region16: #{tpu_custom_call.1} parent=1 // pred_region
      %39 = dma.done [#allocation6], 256
    $region17: #{tpu_custom_call.1} parent=1 // pred_fallthru
      _
    %v40 = vld [vmem:[#allocation2] sm:$0xff]
    %v41 = vld [vmem:[#allocation2 + $0x8] sm:$0xff]
    %v42 = vld [vmem:[#allocation5] sm:$0xff]
    %v43 = vld [vmem:[#allocation5 + $0x8] sm:$0xff]
    %v44 = vsub.f32 %v40, %v42
    %v45 = vsub.f32 %v41, %v43
    %v46 = vmul.f32 %v44, %v44
    %v47 = vmul.f32 %v45, %v45
    %v48 = vadd.f32 %v46, %v47
    %v49 = vrot.slane %v48, 4
    %v50 = vadd.f32 %v48, %v49
    %v51 = vrot.slane %v50, 2
    %v52 = vadd.f32 %v50, %v51
    %v53 = vrot.slane %v52, 1
    %v54 = vadd.f32 %v52, %v53
    %55 = vst [vmem:[#allocation7] sm:$0x1] %v54
    // Predicated region
    $region18: #{tpu_custom_call.1} parent=1 // pred_check
      _
    $region19: #{tpu_custom_call.1} parent=1 // pred_check_branch
      %57 = sbr.rel (0) target = $region21
    $region20: #{tpu_custom_call.1} parent=1 // pred_region
      %s59 = ssub.s32 16, 16
      %60 = vsyncadd [#allocation4], %s59
      %s62 = sshll.u32 [#allocation7], 4
      %s63 = int_to_ptr.vmem [resolvable:$true] %s62
      %65 = dma.vmem_to_hbm [thread:$0]  %s63, 16, %s2, [#allocation4]
    $region21: #{tpu_custom_call.1} parent=1 // pred_fallthru
      _
    // Predicated region
    $region22: #{tpu_custom_call.1} parent=1 // pred_check
      _
    $region23: #{tpu_custom_call.1} parent=1 // pred_check_branch
      %67 = sbr.rel (0) target = $region25
    $region24: #{tpu_custom_call.1} parent=1 // pred_region
      %68 = dma.done [#allocation4], 16
    $region25: #{tpu_custom_call.1} parent=1 // pred_fallthru
      _
    %69 = vsyncpa [#allocation3], 1
    %70 = vsyncpa [#allocation6], 1
    %71 = vsyncpa [#allocation4], 1

</llo_original>
